<compile_context>
chip_gen: v5e
topology: v5e:2x2
jax: 0.10.0
libtpu: 0.0.40
codegen_flags: <defaults>
</compile_context>

<pallas_src>
import functools

import numpy as np
import jax
import jax.numpy as jnp
from jax.experimental import pallas as pl
from jax.experimental.pallas import tpu as pltpu


def _round_up(x, m):
    return (x + m - 1) // m * m


def _hamming(n_fft):
    n = np.arange(n_fft)
    return 0.54 - 0.46 * np.cos(2.0 * np.pi * n / n_fft)          # periodic


def _make_bases(n_fft, win, f_pad):
    """Merged analysis [n_fft, 2*f_pad] and synthesis [2*f_pad, n_fft] DFT bases,
    windows folded in, F zero-padded to a lane-aligned width (zero cols/rows are
    algebraically inert)."""
    F = n_fft // 2 + 1
    n = np.arange(n_fft)[:, None]
    k = np.arange(F)[None, :]
    ang = 2.0 * np.pi * n * k / n_fft                              # [n_fft, F]
    wcos = win[:, None] * np.cos(ang)                              # analysis re
    wsin = -win[:, None] * np.sin(ang)                             # analysis im
    wk = np.full((F,), 2.0)
    wk[0] = 1.0
    if n_fft % 2 == 0:
        wk[-1] = 1.0
    icos = (wk[:, None] / n_fft) * np.cos(ang.T) * win[None, :]    # synthesis re
    isin = (-wk[:, None] / n_fft) * np.sin(ang.T) * win[None, :]   # synthesis im
    pc = ((0, 0), (0, f_pad - F))
    pr = ((0, f_pad - F), (0, 0))
    w_an = np.concatenate([np.pad(wcos, pc), np.pad(wsin, pc)], axis=1)
    w_syn = np.concatenate([np.pad(icos, pr), np.pad(isin, pr)], axis=0)
    return w_an.astype(np.float32), w_syn.astype(np.float32)


def _make_kernel(tile_t, n_shifts, hop, pad_rows, nr_out):
    """Fused STFT -> mask -> iSTFT -> OLA -> normalise/clip -> int16 kernel.

    Refs: xp (1, NC, hop) padded wave in hop-chunks, mask (1, tile_t, F_pad),
    w_an (n_fft, 2F_pad), w_syn (2F_pad, n_fft), env (nr_out, hop),
    out (1, nr_out, hop) int16, acc scratch (n_acc_rows, hop) f32.
    """

    def kernel(xp_ref, mask_ref, wan_ref, wsyn_ref, env_ref, out_ref, acc_ref):
        tt = pl.program_id(1)

        @pl.when(tt == 0)
        def _init():
            acc_ref[...] = jnp.zeros_like(acc_ref)

        base = tt * tile_t

        # Build [tile_t, n_fft] frames in VMEM from overlapping hop-chunks
        # (frame j, segment r) = chunk (base + j + r) of the padded wave.
        parts = [xp_ref[0, pl.ds(base + r, tile_t), :] for r in range(n_shifts)]
        frames = jnp.concatenate(parts, axis=1)                              # [tile_t, n_fft]

        # One merged analysis matmul -> (re | im), mask both halves, one merged
        # synthesis matmul back to windowed time-domain frames.
        spec = jnp.dot(frames, wan_ref[...], preferred_element_type=jnp.float32)
        mk = mask_ref[0]                                                     # [tile_t, F_pad]
        masked = spec * jnp.concatenate([mk, mk], axis=1)
        synth = jnp.dot(masked, wsyn_ref[...], preferred_element_type=jnp.float32)

        # Overlap-add into the chunk-major VMEM accumulator: frame (base+j),
        # segment r lands in accumulator row (base + j + r).
        for r in range(n_shifts):
            rows = pl.ds(base + r, tile_t)
            acc_ref[rows, :] = acc_ref[rows, :] + synth[:, r * hop:(r + 1) * hop]

        @pl.when(tt == pl.num_programs(1) - 1)
        def _finalize():
            # env = 1 / sum(win^2) on the trimmed region, 0 on tail padding.
            wave = acc_ref[pl.ds(pad_rows, nr_out), :] * env_ref[...]        # [nr_out, hop]
            vmax = jnp.max(jnp.abs(wave), axis=(0, 1), keepdims=True)        # [1, 1]
            # fit_wav: identity unless vmax > 2**15; guard (vmax==0 -> scale 1.0).
            scale = jnp.where(vmax > 32768.0,
                              16384.0 * pl.reciprocal(vmax, approx=True),
                              jnp.ones_like(vmax))
            w = jnp.clip(wave * scale, -32768.0, 32767.0)
            out_ref[0] = w.astype(jnp.int32).astype(jnp.int16)               # trunc toward 0

    return kernel


@functools.partial(jax.jit, static_argnames=("n_fft", "hop_length", "tile_t_target"))
def reconstruct_mask2wave(predicted_mask, mixture_wave, length, *,
                          n_fft, hop_length, tile_t_target=256):
    B, L = mixture_wave.shape
    hop = hop_length
    F = n_fft // 2 + 1
    pad = n_fft // 2
    assert n_fft % hop == 0, "hop_length must divide n_fft"
    n_shifts = n_fft // hop
    # TODO(synk): support pad % hop != 0 (odd overlap factors) via an extra shift.
    assert pad % hop == 0, "n_fft//2 must be a multiple of hop_length"

    # Frame / tile geometry (center=True).
    T = 1 + L // hop
    tile_t = min(tile_t_target, _round_up(T, 8))
    T_pad = _round_up(T, tile_t)
    n_tt = T_pad // tile_t
    F_pad = _round_up(F, 128)
    pad_rows = pad // hop
    nr_out = -(-L // hop)                       # ceil(L / hop) output hop-chunks
    NC = T_pad - 1 + n_shifts                   # hop-chunks of padded wave needed
    n_acc_rows = _round_up(max(NC, pad_rows + nr_out), 8)

    # Trace-time constants (numpy): merged DFT bases, window-sum envelope.
    win = _hamming(n_fft)
    w_an_np, w_syn_np = _make_bases(n_fft, win, F_pad)
    wsq = np.zeros(((T - 1) * hop + n_fft,), np.float64)
    w2 = win * win
    for t in range(T):
        wsq[t * hop: t * hop + n_fft] += w2
    env_np = np.zeros((nr_out * hop,), np.float64)
    env_np[:L] = 1.0 / np.maximum(wsq[pad: pad + L], 1e-8)
    env2d = jnp.asarray(env_np.reshape(nr_out, hop), jnp.float32)

    # Glue: reflect center-pad and view as hop-chunks [B, NC, hop] (no gather,
    # no frame materialisation; the /2**15 and *2**15 scalings cancel exactly).
    x = mixture_wave.astype(jnp.float32)
    xp = jnp.pad(x, ((0, 0), (pad, pad)), mode="reflect")
    Lp = xp.shape[1]
    target = NC * hop
    if target >= Lp:
        xp = jnp.pad(xp, ((0, 0), (0, target - Lp)))
    else:
        xp = xp[:, :target]
    xp3d = xp.reshape(B, NC, hop)

    assert predicted_mask.shape == (B, T, F), (predicted_mask.shape, (B, T, F))
    mask_p = jnp.pad(predicted_mask.astype(jnp.float32),
                     ((0, 0), (0, T_pad - T), (0, F_pad - F)))

    # Raise the scoped VMEM limit on chips that have headroom (skip old v2/v3).
    try:
        kind = jax.devices()[0].device_kind.lower()
    except Exception:  # pragma: no cover
        kind = ""
    vmem_limit = None if ("v2" in kind or "v3" in kind) else 48 * 1024 * 1024

    kernel = _make_kernel(tile_t, n_shifts, hop, pad_rows, nr_out)

    out3d = pl.pallas_call(
        kernel,
        out_shape=jax.ShapeDtypeStruct((B, nr_out, hop), jnp.int16),
        grid=(B, n_tt),
        in_specs=[
            pl.BlockSpec((1, NC, hop), lambda b, t: (b, 0, 0)),          # padded wave (resident/row)
            pl.BlockSpec((1, tile_t, F_pad), lambda b, t: (b, t, 0)),    # mask tile
            pl.BlockSpec((n_fft, 2 * F_pad), lambda b, t: (0, 0)),       # analysis basis
            pl.BlockSpec((2 * F_pad, n_fft), lambda b, t: (0, 0)),       # synthesis basis
            pl.BlockSpec((nr_out, hop), lambda b, t: (0, 0)),            # 1/wsq envelope
        ],
        out_specs=pl.BlockSpec((1, nr_out, hop), lambda b, t: (b, 0, 0)),
        scratch_shapes=[pltpu.VMEM((n_acc_rows, hop), jnp.float32)],     # OLA accumulator
        compiler_params=pltpu.CompilerParams(
            dimension_semantics=("parallel", "arbitrary"),
            vmem_limit_bytes=vmem_limit),
    )(xp3d, mask_p, jnp.asarray(w_an_np), jnp.asarray(w_syn_np), env2d)

    reconstructed_wave = out3d.reshape(B, nr_out * hop)[:, :L]
    return reconstructed_wave, length


if __name__ == "__main__":
    key = jax.random.PRNGKey(0)
    B, L, n_fft, hop = 2, 256, 64, 16
    F = n_fft // 2 + 1
    T = 1 + L // hop   # with center padding of n_fft//2 on each side

    k1, k2 = jax.random.split(key)
    mixture_wave = jnp.round(
        jax.random.uniform(k1, (B, L), jnp.float32, -(2.0 ** 14), 2.0 ** 14))
    predicted_mask = jax.random.uniform(k2, (B, T, F), jnp.float32, 0.0, 1.0)
    length = jnp.array([L, L], dtype=jnp.int32)

    wave, out_len = reconstruct_mask2wave(
        predicted_mask, mixture_wave, length, n_fft=n_fft, hop_length=hop)
    jax.block_until_ready(wave)
    assert wave.shape == (B, L) and wave.dtype == jnp.int16
    print("KERNEL_OK")
</pallas_src>

<mosaic_0001>
module attributes {stable_mosaic.version = 11 : i64} {
  func.func @kernel(%arg0: i32, %arg1: i32, %arg2: memref<1x27x16xf32, #tpu.memory_space<vmem>>, %arg3: memref<1x24x128xf32, #tpu.memory_space<vmem>>, %arg4: memref<64x256xf32, #tpu.memory_space<vmem>>, %arg5: memref<256x64xf32, #tpu.memory_space<vmem>>, %arg6: memref<16x16xf32, #tpu.memory_space<vmem>>, %arg7: memref<1x16x16xi16, #tpu.memory_space<vmem>>, %arg8: memref<32x16xf32, #tpu.memory_space<vmem>>) attributes {dimension_semantics = [#tpu.dimension_semantics<parallel>, #tpu.dimension_semantics<arbitrary>], iteration_bounds = array<i64: 2, 1>, scalar_prefetch = 0 : i64, scratch_operands = 1 : i64, tpu.core_type = #tpu.core_type<tc>, window_params = [{transform_indices = @transform_0, window_bounds = array<i64: 1, 27, 16>}, {transform_indices = @transform_1, window_bounds = array<i64: 1, 24, 128>}, {pipeline_mode = #tpu.pipeline_mode<synchronous>, transform_indices = @transform_2, window_bounds = array<i64: 64, 256>}, {pipeline_mode = #tpu.pipeline_mode<synchronous>, transform_indices = @transform_3, window_bounds = array<i64: 256, 64>}, {pipeline_mode = #tpu.pipeline_mode<synchronous>, transform_indices = @transform_4, window_bounds = array<i64: 16, 16>}, {transform_indices = @transform_5, window_bounds = array<i64: 1, 16, 16>}]} {
    %c0_i32 = arith.constant 0 : i32
    %0 = arith.cmpi eq, %arg1, %c0_i32 : i32
    %1 = arith.extui %0 : i1 to i32
    %c0_i32_0 = arith.constant 0 : i32
    %2 = arith.cmpi ne, %1, %c0_i32_0 : i32
    scf.if %2 {
      %cst_31 = arith.constant 0.000000e+00 : f32
      %60 = vector.broadcast %cst_31 : f32 to vector<32x16xf32>
      %c0_32 = arith.constant 0 : index
      %c0_33 = arith.constant 0 : index
      %61 = vector.load %arg8[%c0_32, %c0_33] : memref<32x16xf32, #tpu.memory_space<vmem>>, vector<32x16xf32>
      tpu.vector_store %arg8[%c0_32, %c0_33], %60 {strides = array<i32>} : memref<32x16xf32, #tpu.memory_space<vmem>>, vector<32x16xf32>,
    } else {
    }
    %c24_i32 = arith.constant 24 : i32
    %3 = arith.muli %arg1, %c24_i32 : i32
    %c0_i32_1 = arith.constant 0 : i32
    %4 = arith.addi %3, %c0_i32_1 : i32
    %c0 = arith.constant 0 : index
    %5 = arith.index_cast %4 : i32 to index
    %c0_2 = arith.constant 0 : index
    %6 = vector.load %arg2[%c0, %5, %c0_2] : memref<1x27x16xf32, #tpu.memory_space<vmem>>, vector<1x24x16xf32>
    %7 = vector.shape_cast %6 : vector<1x24x16xf32> to vector<24x16xf32>
    %c1_i32 = arith.constant 1 : i32
    %8 = arith.addi %3, %c1_i32 : i32
    %c0_3 = arith.constant 0 : index
    %9 = arith.index_cast %8 : i32 to index
    %c0_4 = arith.constant 0 : index
    %10 = vector.load %arg2[%c0_3, %9, %c0_4] : memref<1x27x16xf32, #tpu.memory_space<vmem>>, vector<1x24x16xf32>
    %11 = vector.shape_cast %10 : vector<1x24x16xf32> to vector<24x16xf32>
    %c2_i32 = arith.constant 2 : i32
    %12 = arith.addi %3, %c2_i32 : i32
    %c0_5 = arith.constant 0 : index
    %13 = arith.index_cast %12 : i32 to index
    %c0_6 = arith.constant 0 : index
    %14 = vector.load %arg2[%c0_5, %13, %c0_6] : memref<1x27x16xf32, #tpu.memory_space<vmem>>, vector<1x24x16xf32>
    %15 = vector.shape_cast %14 : vector<1x24x16xf32> to vector<24x16xf32>
    %c3_i32 = arith.constant 3 : i32
    %16 = arith.addi %3, %c3_i32 : i32
    %c0_7 = arith.constant 0 : index
    %17 = arith.index_cast %16 : i32 to index
    %c0_8 = arith.constant 0 : index
    %18 = vector.load %arg2[%c0_7, %17, %c0_8] : memref<1x27x16xf32, #tpu.memory_space<vmem>>, vector<1x24x16xf32>
    %19 = vector.shape_cast %18 : vector<1x24x16xf32> to vector<24x16xf32>
    %20 = tpu.concatenate %7, %11, %15, %19 in 1 : vector<24x16xf32>, vector<24x16xf32>, vector<24x16xf32>, vector<24x16xf32> -> vector<24x64xf32>
    %c0_9 = arith.constant 0 : index
    %c0_10 = arith.constant 0 : index
    %21 = vector.load %arg4[%c0_9, %c0_10] : memref<64x256xf32, #tpu.memory_space<vmem>>, vector<64x256xf32>
    %cst = arith.constant dense<0.000000e+00> : vector<24x256xf32>
    %22 = tpu.matmul %20, %21, %cst {dimension_numbers = #tpu.dot_dimension_numbers<[1], [0], [0], [1], [0, 0, 1, 1], [], []>} : vector<24x64xf32>, vector<64x256xf32>, vector<24x256xf32> -> vector<24x256xf32>
    %c0_11 = arith.constant 0 : index
    %c0_12 = arith.constant 0 : index
    %c0_13 = arith.constant 0 : index
    %23 = vector.load %arg3[%c0_11, %c0_12, %c0_13] : memref<1x24x128xf32, #tpu.memory_space<vmem>>, vector<1x24x128xf32>
    %24 = vector.shape_cast %23 : vector<1x24x128xf32> to vector<24x128xf32>
    %25 = tpu.concatenate %24, %24 in 1 : vector<24x128xf32>, vector<24x128xf32> -> vector<24x256xf32>
    %26 = arith.mulf %22, %25 : vector<24x256xf32>
    %c0_14 = arith.constant 0 : index
    %c0_15 = arith.constant 0 : index
    %27 = vector.load %arg5[%c0_14, %c0_15] : memref<256x64xf32, #tpu.memory_space<vmem>>, vector<256x64xf32>
    %cst_16 = arith.constant dense<0.000000e+00> : vector<24x64xf32>
    %28 = tpu.matmul %26, %27, %cst_16 {dimension_numbers = #tpu.dot_dimension_numbers<[1], [0], [0], [1], [0, 0, 1, 1], [], []>} : vector<24x256xf32>, vector<256x64xf32>, vector<24x64xf32> -> vector<24x64xf32>
    %c0_i32_17 = arith.constant 0 : i32
    %29 = arith.addi %3, %c0_i32_17 : i32
    %30 = arith.index_cast %29 : i32 to index
    %c0_18 = arith.constant 0 : index
    %31 = vector.load %arg8[%30, %c0_18] : memref<32x16xf32, #tpu.memory_space<vmem>>, vector<24x16xf32>
    %32 = vector.extract_strided_slice %28 {offsets = [0, 0], sizes = [24, 16], strides = [1, 1]} : vector<24x64xf32> to vector<24x16xf32>
    %33 = arith.addf %31, %32 : vector<24x16xf32>
    %34 = arith.index_cast %29 : i32 to index
    %c0_19 = arith.constant 0 : index
    %35 = vector.load %arg8[%34, %c0_19] : memref<32x16xf32, #tpu.memory_space<vmem>>, vector<24x16xf32>
    tpu.vector_store %arg8[%34, %c0_19], %33 {strides = array<i32>} : memref<32x16xf32, #tpu.memory_space<vmem>>, vector<24x16xf32>,
    %c1_i32_20 = arith.constant 1 : i32
    %36 = arith.addi %3, %c1_i32_20 : i32
    %37 = arith.index_cast %36 : i32 to index
    %c0_21 = arith.constant 0 : index
    %38 = vector.load %arg8[%37, %c0_21] : memref<32x16xf32, #tpu.memory_space<vmem>>, vector<24x16xf32>
    %39 = vector.extract_strided_slice %28 {offsets = [0, 16], sizes = [24, 16], strides = [1, 1]} : vector<24x64xf32> to vector<24x16xf32>
    %40 = arith.addf %38, %39 : vector<24x16xf32>
    %41 = arith.index_cast %36 : i32 to index
    %c0_22 = arith.constant 0 : index
    %42 = vector.load %arg8[%41, %c0_22] : memref<32x16xf32, #tpu.memory_space<vmem>>, vector<24x16xf32>
    tpu.vector_store %arg8[%41, %c0_22], %40 {strides = array<i32>} : memref<32x16xf32, #tpu.memory_space<vmem>>, vector<24x16xf32>,
    %c2_i32_23 = arith.constant 2 : i32
    %43 = arith.addi %3, %c2_i32_23 : i32
    %44 = arith.index_cast %43 : i32 to index
    %c0_24 = arith.constant 0 : index
    %45 = vector.load %arg8[%44, %c0_24] : memref<32x16xf32, #tpu.memory_space<vmem>>, vector<24x16xf32>
    %46 = vector.extract_strided_slice %28 {offsets = [0, 32], sizes = [24, 16], strides = [1, 1]} : vector<24x64xf32> to vector<24x16xf32>
    %47 = arith.addf %45, %46 : vector<24x16xf32>
    %48 = arith.index_cast %43 : i32 to index
    %c0_25 = arith.constant 0 : index
    %49 = vector.load %arg8[%48, %c0_25] : memref<32x16xf32, #tpu.memory_space<vmem>>, vector<24x16xf32>
    tpu.vector_store %arg8[%48, %c0_25], %47 {strides = array<i32>} : memref<32x16xf32, #tpu.memory_space<vmem>>, vector<24x16xf32>,
    %c3_i32_26 = arith.constant 3 : i32
    %50 = arith.addi %3, %c3_i32_26 : i32
    %51 = arith.index_cast %50 : i32 to index
    %c0_27 = arith.constant 0 : index
    %52 = vector.load %arg8[%51, %c0_27] : memref<32x16xf32, #tpu.memory_space<vmem>>, vector<24x16xf32>
    %53 = vector.extract_strided_slice %28 {offsets = [0, 48], sizes = [24, 16], strides = [1, 1]} : vector<24x64xf32> to vector<24x16xf32>
    %54 = arith.addf %52, %53 : vector<24x16xf32>
    %55 = arith.index_cast %50 : i32 to index
    %c0_28 = arith.constant 0 : index
    %56 = vector.load %arg8[%55, %c0_28] : memref<32x16xf32, #tpu.memory_space<vmem>>, vector<24x16xf32>
    tpu.vector_store %arg8[%55, %c0_28], %54 {strides = array<i32>} : memref<32x16xf32, #tpu.memory_space<vmem>>, vector<24x16xf32>,
    %c0_i32_29 = arith.constant 0 : i32
    %57 = arith.cmpi eq, %arg1, %c0_i32_29 : i32
    %58 = arith.extui %57 : i1 to i32
    %c0_i32_30 = arith.constant 0 : i32
    %59 = arith.cmpi ne, %58, %c0_i32_30 : i32
    scf.if %59 {
      %c2 = arith.constant 2 : index
      %c0_31 = arith.constant 0 : index
      %60 = vector.load %arg8[%c2, %c0_31] : memref<32x16xf32, #tpu.memory_space<vmem>>, vector<16x16xf32>
      %c0_32 = arith.constant 0 : index
      %c0_33 = arith.constant 0 : index
      %61 = vector.load %arg6[%c0_32, %c0_33] : memref<16x16xf32, #tpu.memory_space<vmem>>, vector<16x16xf32>
      %62 = arith.mulf %60, %61 : vector<16x16xf32>
      %63 = math.absf %62 : vector<16x16xf32>
      %64 = vector.shape_cast %63 : vector<16x16xf32> to vector<1x16x16xf32>
      %cst_34 = arith.constant dense<0xFF800000> : vector<1xf32>
      %65 = vector.multi_reduction <maximumf>, %64, %cst_34 [1, 2] : vector<1x16x16xf32> to vector<1xf32>
      %66 = vector.shape_cast %65 : vector<1xf32> to vector<1x1x1xf32>
      %67 = vector.extract %66[0, 0, 0] : f32 from vector<1x1x1xf32>
      %68 = vector.broadcast %67 : f32 to vector<1x1xf32>
      %cst_35 = arith.constant 3.276800e+04 : f32
      %69 = vector.broadcast %cst_35 : f32 to vector<1x1xf32>
      %70 = arith.cmpf ogt, %68, %69 : vector<1x1xf32>
      %71 = tpu.reciprocal %68 {approx = true} : vector<1x1xf32> -> vector<1x1xf32>
      %cst_36 = arith.constant 1.638400e+04 : f32
      %72 = vector.broadcast %cst_36 : f32 to vector<1x1xf32>
      %73 = arith.mulf %72, %71 : vector<1x1xf32>
      %cst_37 = arith.constant 1.000000e+00 : f32
      %74 = vector.broadcast %cst_37 : f32 to vector<1x1xf32>
      %75 = arith.select %70, %73, %74 : vector<1x1xi1>, vector<1x1xf32>
      %76 = vector.broadcast %75 : vector<1x1xf32> to vector<16x16xf32>
      %77 = arith.mulf %62, %76 : vector<16x16xf32>
      %cst_38 = arith.constant -3.276800e+04 : f32
      %cst_39 = arith.constant 3.276700e+04 : f32
      %78 = vector.broadcast %cst_38 : f32 to vector<16x16xf32>
      %79 = arith.maximumf %78, %77 : vector<16x16xf32>
      %80 = vector.broadcast %cst_39 : f32 to vector<16x16xf32>
      %81 = arith.minimumf %80, %79 : vector<16x16xf32>
      %82 = arith.fptosi %81 : vector<16x16xf32> to vector<16x16xi32>
      %83 = arith.trunci %82 : vector<16x16xi32> to vector<16x16xi16>
      %c0_40 = arith.constant 0 : index
      %c0_41 = arith.constant 0 : index
      %c0_42 = arith.constant 0 : index
      %84 = vector.load %arg7[%c0_40, %c0_41, %c0_42] : memref<1x16x16xi16, #tpu.memory_space<vmem>>, vector<1x16x16xi16>
      %85 = vector.shape_cast %84 : vector<1x16x16xi16> to vector<16x16xi16>
      %86 = vector.shape_cast %83 : vector<16x16xi16> to vector<1x16x16xi16>
      tpu.vector_store %arg7[%c0_40, %c0_41, %c0_42], %86 {strides = array<i32>} : memref<1x16x16xi16, #tpu.memory_space<vmem>>, vector<1x16x16xi16>,
    } else {
    }
    return
  }
  func.func @transform_0(%arg0: i32, %arg1: i32) -> (i32, i32, i32) {
    %c0_i32 = arith.constant 0 : i32
    %c0_i32_0 = arith.constant 0 : i32
    %c0_i32_1 = arith.constant 0 : i32
    return %arg0, %c0_i32, %c0_i32_0 : i32, i32, i32
  }
  func.func @transform_1(%arg0: i32, %arg1: i32) -> (i32, i32, i32) {
    %c0_i32 = arith.constant 0 : i32
    %c0_i32_0 = arith.constant 0 : i32
    return %arg0, %arg1, %c0_i32 : i32, i32, i32
  }
  func.func @transform_2(%arg0: i32, %arg1: i32) -> (i32, i32) {
    %c0_i32 = arith.constant 0 : i32
    %c0_i32_0 = arith.constant 0 : i32
    %c0_i32_1 = arith.constant 0 : i32
    return %c0_i32, %c0_i32_0 : i32, i32
  }
  func.func @transform_3(%arg0: i32, %arg1: i32) -> (i32, i32) {
    %c0_i32 = arith.constant 0 : i32
    %c0_i32_0 = arith.constant 0 : i32
    %c0_i32_1 = arith.constant 0 : i32
    return %c0_i32, %c0_i32_0 : i32, i32
  }
  func.func @transform_4(%arg0: i32, %arg1: i32) -> (i32, i32) {
    %c0_i32 = arith.constant 0 : i32
    %c0_i32_0 = arith.constant 0 : i32
    %c0_i32_1 = arith.constant 0 : i32
    return %c0_i32, %c0_i32_0 : i32, i32
  }
  func.func @transform_5(%arg0: i32, %arg1: i32) -> (i32, i32, i32) {
    %c0_i32 = arith.constant 0 : i32
    %c0_i32_0 = arith.constant 0 : i32
    %c0_i32_1 = arith.constant 0 : i32
    return %arg0, %c0_i32, %c0_i32_0 : i32, i32, i32
  }
}

</mosaic_0001>

<llo_original>
// kernel: reconstruct_mask2wave.1
$region0: #{reconstruct_mask2wave.1}
  #allocation0 [shape = 'u32[]', space=smem, size = 0x4, offset = 0x4, fixed_abs, tag = 'smem constant byte address 0x4 - core index']
  #allocation1 [shape = 'u32[72,128]{1,0:T(1,128)}', space=vmem, size = 0x9000, scoped, tag = 'internal scratch']
  #allocation2 [shape = 'f32[32,16]{1,0:T(8,128)}', space=vmem, size = 0x4000, scoped, tag = 'scratch operand']
  %s0 = inlined_call_operand.vmem [shape: f32[2,27,16], index: 0, kind: input, shape index: {}]
  %s1 = inlined_call_operand.vmem [shape: f32[2,24,128], index: 1, kind: input, shape index: {}]
  %s2 = inlined_call_operand.hbm [shape: f32[64,256], index: 2, kind: input, shape index: {}]
  %s3 = inlined_call_operand.vmem [shape: f32[256,64], index: 3, kind: input, shape index: {}]
  %s4 = inlined_call_operand.vmem [shape: f32[16,16], index: 4, kind: input, shape index: {}]
  %s5 = inlined_call_operand.vmem [shape: s16[2,16,16], index: 5, kind: output, shape index: {}]
  %s6 = sld [smem:[#allocation0]]
  $region65: #{reconstruct_mask2wave.1} parent=0
    _
  %s8 = ssub.s32 1, %s6
  %s9 = scalar_select 0, %s8, %s6
  $region1: #{reconstruct_mask2wave.1} parent=0
    #allocation3 [shape = 'u8[65536]{0}', space=vmem, size = 0x10000, scoped, tag = 'input window, operand 2, single buffered']
    #allocation4 [shape = 's32[2]{0}', space=sflag, size = 0x8, scoped, tag = 'scoped memory for reconstruct_mask2wave.1']
    %10 = vsyncpa [#allocation4], 0
    loop: start=0, step=1, limit=4
    $region2: #{reconstruct_mask2wave.1} parent=1 // loop_pre_header
      _
    $region3: #{reconstruct_mask2wave.1} parent=1 // loop_header
      %s12 = sphi 0, %s16
      %p13 = scmp.ge.s32.totalorder %s12, 4
      %s19 = sphi 0, %s31
      %s20 = sphi 0, %s27
      %s21 = sphi 0, %s19
      %s22 = sphi 0, %s20
      %s23 = sphi 0, %s21
      %s24 = sphi 0, %s22
      %s34 = sphi 0, %s36
      %s37 = sphi 0, %s34
      %s38 = sphi 0, %s37
      %s54 = sphi 0, %s38
      %s62 = sphi 0, %s64
      %s65 = sphi 0, %s62
      %s66 = sphi 0, %s65
      %s82 = sphi 0, %s66
      %s86 = sphi 0, %s86
      %s88 = sphi 0, %s86
      %s89 = sphi 0, %s88
      %s103 = sphi 0, %s89
      %s107 = sphi 0, %s107
      %s109 = sphi 0, %s107
      %s110 = sphi 0, %s109
      %s124 = sphi 0, %s110
      %s128 = sphi 0, %s128
      %s130 = sphi 0, %s128
      %s131 = sphi 0, %s130
      %s145 = sphi 0, %s131
      %s151 = sphi 0, %s153
      %s154 = sphi 0, %s151
      %s155 = sphi 0, %s154
      %s171 = sphi 0, %s155
    $region4: #{reconstruct_mask2wave.1} parent=1 // loop_header_branch
      %15 = sbr.rel (%p13) target = $region8
    $region5: #{reconstruct_mask2wave.1} parent=1 // loop_body
      %s17 = ssub.s32 %s12, 1
      %s18 = ssub.s32 %s12, 2
      %s25 = sadd.s32 1, %s20
      %p26 = scmp.ge.s32.totalorder %s25, 1
      %s27 = scalar_select %p26, 0, %s25
      %s28 = sadd.s32 1, %s19
      %s29 = scalar_select %p26, %s28, %s19
      %p30 = scmp.ge.s32.totalorder %s29, 2
      %s31 = scalar_select %p30, 0, %s29
      %s32 = ssub.s32 %s19, %s31
      %p33 = scmp.eq.s32.totalorder %s32, 0
      %s35 = sadd.s32 %s34, 1
      %s36 = scalar_select %p33, %s34, %s35
      %p39 = pneg %p33
      %p40 = scmp.eq.s32.totalorder %s12, 1
      %p41 = por %p39, %p40
      %p42 = scmp.ne.s32.totalorder %s34, %s37
      %p43 = scmp.eq.s32.totalorder %s12, 0
      %p44 = por %p42, %p43
      %p45 = scmp.ne.s32.totalorder %s34, %s37
      %p46 = scmp.eq.s32.totalorder %s17, 1
      %p47 = por %p45, %p46
      %p48 = scmp.ne.s32.totalorder %s37, %s38
      %p49 = scmp.eq.s32.totalorder %s17, 0
      %p50 = por %p48, %p49
      %p51 = scmp.ne.s32.totalorder %s37, %s38
      %p52 = scmp.eq.s32.totalorder %s18, 1
      %p53 = por %p51, %p52
      %p55 = scmp.ne.s32.totalorder %s38, %s54
      %p56 = scmp.eq.s32.totalorder %s18, 0
      %p57 = por %p55, %p56
      %s58 = ssub.s32 %s19, %s31
      %s59 = ssub.s32 %s20, %s27
      %s60 = sor.u32 %s58, %s59
      %p61 = scmp.eq.s32.totalorder %s60, 0
      %s63 = sadd.s32 %s62, 1
      %s64 = scalar_select %p61, %s62, %s63
      %p67 = pneg %p61
      %p68 = scmp.eq.s32.totalorder %s12, 1
      %p69 = por %p67, %p68
      %p70 = scmp.ne.s32.totalorder %s62, %s65
      %p71 = scmp.eq.s32.totalorder %s12, 0
      %p72 = por %p70, %p71
      %p73 = scmp.ne.s32.totalorder %s62, %s65
      %p74 = scmp.eq.s32.totalorder %s17, 1
      %p75 = por %p73, %p74
      %p76 = scmp.ne.s32.totalorder %s65, %s66
      %p77 = scmp.eq.s32.totalorder %s17, 0
      %p78 = por %p76, %p77
      %p79 = scmp.ne.s32.totalorder %s65, %s66
      %p80 = scmp.eq.s32.totalorder %s18, 1
      %p81 = por %p79, %p80
      %p83 = scmp.ne.s32.totalorder %s66, %s82
      %p84 = scmp.eq.s32.totalorder %s18, 0
      %p85 = por %p83, %p84
      %s87 = sadd.s32 %s86, 1
      %p90 = scmp.eq.s32.totalorder %s12, 1
      %p91 = scmp.ne.s32.totalorder %s86, %s88
      %p92 = scmp.eq.s32.totalorder %s12, 0
      %p93 = por %p91, %p92
      %p94 = scmp.ne.s32.totalorder %s86, %s88
      %p95 = scmp.eq.s32.totalorder %s17, 1
      %p96 = por %p94, %p95
      %p97 = scmp.ne.s32.totalorder %s88, %s89
      %p98 = scmp.eq.s32.totalorder %s17, 0
      %p99 = por %p97, %p98
      %p100 = scmp.ne.s32.totalorder %s88, %s89
      %p101 = scmp.eq.s32.totalorder %s18, 1
      %p102 = por %p100, %p101
      %p104 = scmp.ne.s32.totalorder %s89, %s103
      %p105 = scmp.eq.s32.totalorder %s18, 0
      %p106 = por %p104, %p105
      %s108 = sadd.s32 %s107, 1
      %p111 = scmp.eq.s32.totalorder %s12, 1
      %p112 = scmp.ne.s32.totalorder %s107, %s109
      %p113 = scmp.eq.s32.totalorder %s12, 0
      %p114 = por %p112, %p113
      %p115 = scmp.ne.s32.totalorder %s107, %s109
      %p116 = scmp.eq.s32.totalorder %s17, 1
      %p117 = por %p115, %p116
      %p118 = scmp.ne.s32.totalorder %s109, %s110
      %p119 = scmp.eq.s32.totalorder %s17, 0
      %p120 = por %p118, %p119
      %p121 = scmp.ne.s32.totalorder %s109, %s110
      %p122 = scmp.eq.s32.totalorder %s18, 1
      %p123 = por %p121, %p122
      %p125 = scmp.ne.s32.totalorder %s110, %s124
      %p126 = scmp.eq.s32.totalorder %s18, 0
      %p127 = por %p125, %p126
      %s129 = sadd.s32 %s128, 1
      %p132 = scmp.eq.s32.totalorder %s12, 1
      %p133 = scmp.ne.s32.totalorder %s128, %s130
      %p134 = scmp.eq.s32.totalorder %s12, 0
      %p135 = por %p133, %p134
      %p136 = scmp.ne.s32.totalorder %s128, %s130
      %p137 = scmp.eq.s32.totalorder %s17, 1
      %p138 = por %p136, %p137
      %p139 = scmp.ne.s32.totalorder %s130, %s131
      %p140 = scmp.eq.s32.totalorder %s17, 0
      %p141 = por %p139, %p140
      %p142 = scmp.ne.s32.totalorder %s130, %s131
      %p143 = scmp.eq.s32.totalorder %s18, 1
      %p144 = por %p142, %p143
      %p146 = scmp.ne.s32.totalorder %s131, %s145
      %p147 = scmp.eq.s32.totalorder %s18, 0
      %p148 = por %p146, %p147
      %s149 = ssub.s32 %s19, %s31
      %p150 = scmp.eq.s32.totalorder %s149, 0
      %s152 = sadd.s32 %s151, 1
      %s153 = scalar_select %p150, %s151, %s152
      %p156 = pneg %p150
      %p157 = scmp.eq.s32.totalorder %s12, 1
      %p158 = por %p156, %p157
      %p159 = scmp.ne.s32.totalorder %s151, %s154
      %p160 = scmp.eq.s32.totalorder %s12, 0
      %p161 = por %p159, %p160
      %p162 = scmp.ne.s32.totalorder %s151, %s154
      %p163 = scmp.eq.s32.totalorder %s17, 1
      %p164 = por %p162, %p163
      %p165 = scmp.ne.s32.totalorder %s154, %s155
      %p166 = scmp.eq.s32.totalorder %s17, 0
      %p167 = por %p165, %p166
      %p168 = scmp.ne.s32.totalorder %s154, %s155
      %p169 = scmp.eq.s32.totalorder %s18, 1
      %p170 = por %p168, %p169
      %p172 = scmp.ne.s32.totalorder %s155, %s171
      %p173 = scmp.eq.s32.totalorder %s18, 0
      %p174 = por %p172, %p173
      %p175 = scmp.le.s32.totalorder 1, %s12
      %p176 = scmp.lt.s32.totalorder %s12, 3
      %p177 = pnand %p175, %p176
      %p178 = pneg %p177
      // Predicated region
      $region9: #{reconstruct_mask2wave.1} parent=5 // pred_check
        _
      $region10: #{reconstruct_mask2wave.1} parent=5 // pred_check_branch
        %180 = sbr.rel (%p177) target = $region12
      $region11: #{reconstruct_mask2wave.1} parent=5 // pred_region
        %s181 = ssub.s32 %s12, 1
        // Predicated region
        $region13: #{reconstruct_mask2wave.1} parent=11 // pred_check
          %p182 = pneg %p99
        $region14: #{reconstruct_mask2wave.1} parent=11 // pred_check_branch
          %184 = sbr.rel (%p182) target = $region16
        $region15: #{reconstruct_mask2wave.1} parent=11 // pred_region
          %186 = vsyncadd [#allocation4], 0
          %s187 = sshll.u32 %s2, 4
          %s188 = int_to_ptr.hbm [resolvable:$true] %s187
          %s189 = sshll.u32 [#allocation3], 4
          %s190 = int_to_ptr.vmem [resolvable:$true] %s189
          %195 = dma.hbm_to_vmem [thread:$0]  %s188, 2048, %s190, [#allocation4], 256, 256, 16
        $region16: #{reconstruct_mask2wave.1} parent=11 // pred_fallthru
          _
        // Predicated region
        $region17: #{reconstruct_mask2wave.1} parent=11 // pred_check
          %p196 = pneg %p120
        $region18: #{reconstruct_mask2wave.1} parent=11 // pred_check_branch
          %198 = sbr.rel (%p196) target = $region20
        $region19: #{reconstruct_mask2wave.1} parent=11 // pred_region
          _
        $region20: #{reconstruct_mask2wave.1} parent=11 // pred_fallthru
          _
        // Predicated region
        $region21: #{reconstruct_mask2wave.1} parent=11 // pred_check
          %p199 = pneg %p141
        $region22: #{reconstruct_mask2wave.1} parent=11 // pred_check_branch
          %201 = sbr.rel (%p199) target = $region24
        $region23: #{reconstruct_mask2wave.1} parent=11 // pred_region
          _
        $region24: #{reconstruct_mask2wave.1} parent=11 // pred_fallthru
          _
      $region12: #{reconstruct_mask2wave.1} parent=5 // pred_fallthru
        _
      %p202 = scmp.lt.s32.totalorder %s12, 2
      // Predicated region
      $region25: #{reconstruct_mask2wave.1} parent=5 // pred_check
        %p203 = pneg %p202
      $region26: #{reconstruct_mask2wave.1} parent=5 // pred_check_branch
        %205 = sbr.rel (%p203) target = $region28
      $region27: #{reconstruct_mask2wave.1} parent=5 // pred_region
        // Predicated region
        $region29: #{reconstruct_mask2wave.1} parent=27 // pred_check
          %p206 = pneg %p44
        $region30: #{reconstruct_mask2wave.1} parent=27 // pred_check_branch
          %208 = sbr.rel (%p206) target = $region32
        $region31: #{reconstruct_mask2wave.1} parent=27 // pred_region
          %p209 = scmp.lt.s32.totalorder %s19, 1
          %s210 = scalar_select %p209, %s19, 1
          %s211 = smul.addr %s210, 4
          %s212 = smul.addr %s211, 8
          %s213 = scalar_lea.vmem %s0, %s212
        $region32: #{reconstruct_mask2wave.1} parent=27 // pred_fallthru
          _
        // Predicated region
        $region33: #{reconstruct_mask2wave.1} parent=27 // pred_check
          %p214 = pneg %p72
        $region34: #{reconstruct_mask2wave.1} parent=27 // pred_check_branch
          %216 = sbr.rel (%p214) target = $region36
        $region35: #{reconstruct_mask2wave.1} parent=27 // pred_region
          %s217 = smul.u32 3, %s20
          %p218 = scmp.lt.s32.totalorder %s19, 1
          %s219 = scalar_select %p218, %s19, 1
          %p220 = scmp.lt.s32.totalorder %s217, 2
          %s221 = scalar_select %p220, %s217, 2
          %s222 = smul.addr %s219, 3
          %s223 = sadd.s32 %s221, %s222
          %s224 = smul.addr %s223, 8
          %s225 = scalar_lea.vmem %s1, %s224
          %s226 = smul.u32 3, %s20
        $region36: #{reconstruct_mask2wave.1} parent=27 // pred_fallthru
          _
      $region28: #{reconstruct_mask2wave.1} parent=5 // pred_fallthru
        _
      %p227 = scmp.le.s32.totalorder 1, %s12
      %p228 = scmp.lt.s32.totalorder %s12, 3
      %p229 = pnand %p227, %p228
      %p230 = pneg %p229
      // Predicated region
      $region37: #{reconstruct_mask2wave.1} parent=5 // pred_check
        _
      $region38: #{reconstruct_mask2wave.1} parent=5 // pred_check_branch
        %232 = sbr.rel (%p229) target = $region40
      $region39: #{reconstruct_mask2wave.1} parent=5 // pred_region
        %s233 = ssub.s32 %s12, 1
        // Predicated region
        $region41: #{reconstruct_mask2wave.1} parent=39 // pred_check
          %p234 = pneg %p99
        $region42: #{reconstruct_mask2wave.1} parent=39 // pred_check_branch
          %236 = sbr.rel (%p234) target = $region44
        $region43: #{reconstruct_mask2wave.1} parent=39 // pred_region
          %238 = dma.done [#allocation4], 2048
        $region44: #{reconstruct_mask2wave.1} parent=39 // pred_fallthru
          _
        %p239 = scmp.lt.s32.totalorder %s21, 1
        %s240 = scalar_select %p239, %s21, 1
        %s241 = smul.addr %s240, 4
        %s242 = smul.addr %s241, 8
        %s243 = scalar_lea.vmem %s0, %s242
        %p244 = pneg %p50
        %p245 = pneg %p47
        %s246 = smul.u32 3, %s22
        %p247 = scmp.lt.s32.totalorder %s21, 1
        %s248 = scalar_select %p247, %s21, 1
        %p249 = scmp.lt.s32.totalorder %s246, 2
        %s250 = scalar_select %p249, %s246, 2
        %s251 = smul.addr %s248, 3
        %s252 = sadd.s32 %s250, %s251
        %s253 = smul.addr %s252, 8
        %s254 = scalar_lea.vmem %s1, %s253
        %p255 = pneg %p78
        %p256 = pneg %p75
        %p257 = pneg %p99
        %p258 = pneg %p96
        %p259 = pneg %p120
        %p260 = pneg %p117
        %p261 = pneg %p141
        %p262 = pneg %p138
        %p263 = pneg %p167
        %p264 = pneg %p164
        %p265 = scmp.lt.s32.totalorder %s21, 1
        %s266 = scalar_select %p265, %s21, 1
        %s267 = smul.addr %s266, 2
        %s268 = smul.addr %s267, 4
        %s269 = scalar_lea.vmem %s5, %s268
        %p270 = scmp.lt.s32.totalorder %s21, 1
        %s271 = scalar_select %p270, %s21, 1
        %s272 = smul.addr %s271, 4
        %s273 = smul.addr %s272, 8
        %s274 = scalar_lea.vmem %s0, %s273
        %s275 = smul.u32 3, %s22
        %p276 = scmp.lt.s32.totalorder %s21, 1
        %s277 = scalar_select %p276, %s21, 1
        %p278 = scmp.lt.s32.totalorder %s275, 2
        %s279 = scalar_select %p278, %s275, 2
        %s280 = smul.addr %s277, 3
        %s281 = sadd.s32 %s279, %s280
        %s282 = smul.addr %s281, 8
        %s283 = scalar_lea.vmem %s1, %s282
        %s284 = smul.u32 3, %s22
        %p285 = scmp.lt.s32.totalorder %s21, 1
        %s286 = scalar_select %p285, %s21, 1
        %s287 = smul.addr %s286, 2
        %s288 = smul.addr %s287, 4
        %s289 = scalar_lea.vmem %s5, %s288
        %p290 = scmp.eq.s32.totalorder %s22, 0
        // Predicated region
        $region45: #{reconstruct_mask2wave.1} parent=39 // pred_check
          %p291 = pneg %p290
        $region46: #{reconstruct_mask2wave.1} parent=39 // pred_check_branch
          %293 = sbr.rel (%p291) target = $region48
        $region47: #{reconstruct_mask2wave.1} parent=39 // pred_region
          %vm294 = vcmask 130048
          %295 = vst.msk [vmem:[#allocation2] sm:$0xff] %vm294, 0.0
          %296 = vst.msk [vmem:[#allocation2 + $0x8] sm:$0xff] %vm294, 0.0
          %297 = vst.msk [vmem:[#allocation2 + $0x10] sm:$0xff] %vm294, 0.0
          %298 = vst.msk [vmem:[#allocation2 + $0x18] sm:$0xff] %vm294, 0.0
        $region48: #{reconstruct_mask2wave.1} parent=39 // pred_fallthru
          _
        %s299 = smul.u32 %s22, 24
        %s300 = scalar_lea.vmem %s274, %s299
        %v301 = vld [vmem:[%s300] sm:$0xff]
        %v302 = vld [vmem:[%s300 + $0x8] sm:$0xff]
        %v303 = vld [vmem:[%s300 + $0x10] sm:$0xff]
        %s304 = sadd.s32 %s299, 1
        %s305 = scalar_lea.vmem %s274, %s304
        %v306 = vld [vmem:[%s305] sm:$0xff]
        %v307 = vld [vmem:[%s305 + $0x8] sm:$0xff]
        %v308 = vld [vmem:[%s305 + $0x10] sm:$0xff]
        %s309 = sadd.s32 %s299, 2
        %s310 = scalar_lea.vmem %s274, %s309
        %v311 = vld [vmem:[%s310] sm:$0xff]
        %v312 = vld [vmem:[%s310 + $0x8] sm:$0xff]
        %v313 = vld [vmem:[%s310 + $0x10] sm:$0xff]
        %s314 = sadd.s32 %s299, 3
        %s315 = scalar_lea.vmem %s274, %s314
        %v316 = vld [vmem:[%s315] sm:$0xff]
        %v317 = vld [vmem:[%s315 + $0x8] sm:$0xff]
        %v318 = vld [vmem:[%s315 + $0x10] sm:$0xff]
        %322 = vrot.lane.b32.xlu0 %v306, 16
        %v323 = vpop.permute.xlu0 %322
        %324 = vrot.lane.b32.xlu0 %v307, 16
        %v325 = vpop.permute.xlu0 %324
        %326 = vrot.lane.b32.xlu0 %v308, 16
        %v327 = vpop.permute.xlu0 %326
        %334 = vrot.lane.b32.xlu0 %v311, 32
        %v335 = vpop.permute.xlu0 %334
        %336 = vrot.lane.b32.xlu0 %v312, 32
        %v337 = vpop.permute.xlu0 %336
        %338 = vrot.lane.b32.xlu0 %v313, 32
        %v339 = vpop.permute.xlu0 %338
        %346 = vrot.lane.b32.xlu0 %v316, 48
        %v347 = vpop.permute.xlu0 %346
        %348 = vrot.lane.b32.xlu0 %v317, 48
        %v349 = vpop.permute.xlu0 %348
        %350 = vrot.lane.b32.xlu0 %v318, 48
        %v351 = vpop.permute.xlu0 %350
        %vm355 = vcmask 130048
        %v356 = vsel %vm355, %v301, %v323
        %v357 = vsel %vm355, %v302, %v325
        %v358 = vsel %vm355, %v303, %v327
        %vm359 = vcmask 261120
        %v360 = vsel %vm359, %v356, %v335
        %v361 = vsel %vm359, %v357, %v337
        %v362 = vsel %vm359, %v358, %v339
        %vm363 = vcmask 392192
        %v364 = vsel %vm363, %v360, %v347
        %v365 = vsel %vm363, %v361, %v349
        %v366 = vsel %vm363, %v362, %v351
        %v367 = vld [vmem:[#allocation3] sm:$0xff]
        %v368 = vld [vmem:[#allocation3 + $0x8] sm:$0xff]
        %v369 = vld [vmem:[#allocation3 + $0x10] sm:$0xff]
        %v370 = vld [vmem:[#allocation3 + $0x18] sm:$0xff]
        %v371 = vld [vmem:[#allocation3 + $0x20] sm:$0xff]
        %v372 = vld [vmem:[#allocation3 + $0x28] sm:$0xff]
        %v373 = vld [vmem:[#allocation3 + $0x30] sm:$0xff]
        %v374 = vld [vmem:[#allocation3 + $0x38] sm:$0xff]
        %v375 = vld [vmem:[#allocation3 + $0x40] sm:$0xff]
        %v376 = vld [vmem:[#allocation3 + $0x48] sm:$0xff]
        %v377 = vld [vmem:[#allocation3 + $0x50] sm:$0xff]
        %v378 = vld [vmem:[#allocation3 + $0x58] sm:$0xff]
        %v379 = vld [vmem:[#allocation3 + $0x60] sm:$0xff]
        %v380 = vld [vmem:[#allocation3 + $0x68] sm:$0xff]
        %v381 = vld [vmem:[#allocation3 + $0x70] sm:$0xff]
        %v382 = vld [vmem:[#allocation3 + $0x78] sm:$0xff]
        %vm383 = vcmask 523264
        %v385 = vsel %vm383, %v364, 0
        %v388 = vsel %vm383, %v365, 0
        %v391 = vsel %vm383, %v366, 0
        %393 = vmatpush.msra.mxu0 0.0
        %394 = vmatpush.msra.mxu0 0.0
        %395 = vmatpush.msra.mxu0 0.0
        %396 = vmatpush.msra.mxu0 0.0
        %397 = vmatpush.msra.mxu0 0.0
        %398 = vmatpush.msra.mxu0 0.0
        %399 = vmatpush.msra.mxu0 0.0
        %400 = vmatpush.msra.mxu0 0.0
        %401 = vmatpush.msra.mxu0 %v381
        %402 = vmatpush.msra.mxu0 %v379
        %403 = vmatpush.msra.mxu0 %v377
        %404 = vmatpush.msra.mxu0 %v375
        %405 = vmatpush.msra.mxu0 %v373
        %406 = vmatpush.msra.mxu0 %v371
        %407 = vmatpush.msra.mxu0 %v369
        %408 = vmatpush.msra.mxu0 %v367
        %409 = vmatmul.f32.gmra.mxu0 %v385
        %v410 = vpop.f32.mrf.mxu0
        %v411 = vadd.f32 0.0, %v410
        %412 = vmatmul.f32.gmra.mxu0 %v388
        %v413 = vpop.f32.mrf.mxu0
        %v414 = vadd.f32 0.0, %v413
        %415 = vmatmul.f32.gmra.mxu0 %v391
        %v416 = vpop.f32.mrf.mxu0
        %v417 = vadd.f32 0.0, %v416
        %418 = vdwg.mxu0
        %419 = vmatpush.msra.mxu0 0.0
        %420 = vmatpush.msra.mxu0 0.0
        %421 = vmatpush.msra.mxu0 0.0
        %422 = vmatpush.msra.mxu0 0.0
        %423 = vmatpush.msra.mxu0 0.0
        %424 = vmatpush.msra.mxu0 0.0
        %425 = vmatpush.msra.mxu0 0.0
        %426 = vmatpush.msra.mxu0 0.0
        %427 = vmatpush.msra.mxu0 %v382
        %428 = vmatpush.msra.mxu0 %v380
        %429 = vmatpush.msra.mxu0 %v378
        %430 = vmatpush.msra.mxu0 %v376
        %431 = vmatpush.msra.mxu0 %v374
        %432 = vmatpush.msra.mxu0 %v372
        %433 = vmatpush.msra.mxu0 %v370
        %434 = vmatpush.msra.mxu0 %v368
        %435 = vmatmul.f32.gmra.mxu0 %v385
        %v436 = vpop.f32.mrf.mxu0
        %v437 = vadd.f32 0.0, %v436
        %438 = vmatmul.f32.gmra.mxu0 %v388
        %v439 = vpop.f32.mrf.mxu0
        %v440 = vadd.f32 0.0, %v439
        %441 = vmatmul.f32.gmra.mxu0 %v391
        %v442 = vpop.f32.mrf.mxu0
        %v443 = vadd.f32 0.0, %v442
        %444 = vdwg.mxu0
        %v445 = vld [vmem:[%s283] sm:$0xff]
        %v446 = vld [vmem:[%s283 + $0x8] sm:$0xff]
        %v447 = vld [vmem:[%s283 + $0x10] sm:$0xff]
        %v448 = vmul.f32 %v411, %v445
        %v449 = vmul.f32 %v437, %v445
        %v450 = vmul.f32 %v414, %v446
        %v451 = vmul.f32 %v440, %v446
        %v452 = vmul.f32 %v417, %v447
        %v453 = vmul.f32 %v443, %v447
        %v454 = vld [vmem:[%s3] sm:$0xff]
        %v455 = vld [vmem:[%s3 + $0x8] sm:$0xff]
        %v456 = vld [vmem:[%s3 + $0x10] sm:$0xff]
        %v457 = vld [vmem:[%s3 + $0x18] sm:$0xff]
        %v458 = vld [vmem:[%s3 + $0x20] sm:$0xff]
        %v459 = vld [vmem:[%s3 + $0x28] sm:$0xff]
        %v460 = vld [vmem:[%s3 + $0x30] sm:$0xff]
        %v461 = vld [vmem:[%s3 + $0x38] sm:$0xff]
        %v462 = vld [vmem:[%s3 + $0x40] sm:$0xff]
        %v463 = vld [vmem:[%s3 + $0x48] sm:$0xff]
        %v464 = vld [vmem:[%s3 + $0x50] sm:$0xff]
        %v465 = vld [vmem:[%s3 + $0x58] sm:$0xff]
        %v466 = vld [vmem:[%s3 + $0x60] sm:$0xff]
        %v467 = vld [vmem:[%s3 + $0x68] sm:$0xff]
        %v468 = vld [vmem:[%s3 + $0x70] sm:$0xff]
        %v469 = vld [vmem:[%s3 + $0x78] sm:$0xff]
        %v470 = vld [vmem:[%s3 + $0x80] sm:$0xff]
        %v471 = vld [vmem:[%s3 + $0x88] sm:$0xff]
        %v472 = vld [vmem:[%s3 + $0x90] sm:$0xff]
        %v473 = vld [vmem:[%s3 + $0x98] sm:$0xff]
        %v474 = vld [vmem:[%s3 + $0xa0] sm:$0xff]
        %v475 = vld [vmem:[%s3 + $0xa8] sm:$0xff]
        %v476 = vld [vmem:[%s3 + $0xb0] sm:$0xff]
        %v477 = vld [vmem:[%s3 + $0xb8] sm:$0xff]
        %v478 = vld [vmem:[%s3 + $0xc0] sm:$0xff]
        %v479 = vld [vmem:[%s3 + $0xc8] sm:$0xff]
        %v480 = vld [vmem:[%s3 + $0xd0] sm:$0xff]
        %v481 = vld [vmem:[%s3 + $0xd8] sm:$0xff]
        %v482 = vld [vmem:[%s3 + $0xe0] sm:$0xff]
        %v483 = vld [vmem:[%s3 + $0xe8] sm:$0xff]
        %v484 = vld [vmem:[%s3 + $0xf0] sm:$0xff]
        %v485 = vld [vmem:[%s3 + $0xf8] sm:$0xff]
        %486 = vmatpush.msra.mxu0 %v469
        %487 = vmatpush.msra.mxu0 %v468
        %488 = vmatpush.msra.mxu0 %v467
        %489 = vmatpush.msra.mxu0 %v466
        %490 = vmatpush.msra.mxu0 %v465
        %491 = vmatpush.msra.mxu0 %v464
        %492 = vmatpush.msra.mxu0 %v463
        %493 = vmatpush.msra.mxu0 %v462
        %494 = vmatpush.msra.mxu0 %v461
        %495 = vmatpush.msra.mxu0 %v460
        %496 = vmatpush.msra.mxu0 %v459
        %497 = vmatpush.msra.mxu0 %v458
        %498 = vmatpush.msra.mxu0 %v457
        %499 = vmatpush.msra.mxu0 %v456
        %500 = vmatpush.msra.mxu0 %v455
        %501 = vmatpush.msra.mxu0 %v454
        %502 = vmatmul.f32.gmra.mxu0 %v448
        %v503 = vpop.f32.mrf.mxu0
        %v504 = vadd.f32 0.0, %v503
        %505 = vmatmul.f32.gmra.mxu0 %v450
        %v506 = vpop.f32.mrf.mxu0
        %v507 = vadd.f32 0.0, %v506
        %508 = vmatmul.f32.gmra.mxu0 %v452
        %v509 = vpop.f32.mrf.mxu0
        %v510 = vadd.f32 0.0, %v509
        %511 = vdwg.mxu0
        %512 = vmatpush.msra.mxu0 %v485
        %513 = vmatpush.msra.mxu0 %v484
        %514 = vmatpush.msra.mxu0 %v483
        %515 = vmatpush.msra.mxu0 %v482
        %516 = vmatpush.msra.mxu0 %v481
        %517 = vmatpush.msra.mxu0 %v480
        %518 = vmatpush.msra.mxu0 %v479
        %519 = vmatpush.msra.mxu0 %v478
        %520 = vmatpush.msra.mxu0 %v477
        %521 = vmatpush.msra.mxu0 %v476
        %522 = vmatpush.msra.mxu0 %v475
        %523 = vmatpush.msra.mxu0 %v474
        %524 = vmatpush.msra.mxu0 %v473
        %525 = vmatpush.msra.mxu0 %v472
        %526 = vmatpush.msra.mxu0 %v471
        %527 = vmatpush.msra.mxu0 %v470
        %528 = vmatmul.f32.gmra.mxu0 %v449
        %v529 = vpop.f32.mrf.mxu0
        %v530 = vadd.f32 %v504, %v529
        %531 = vmatmul.f32.gmra.mxu0 %v451
        %v532 = vpop.f32.mrf.mxu0
        %v533 = vadd.f32 %v507, %v532
        %534 = vmatmul.f32.gmra.mxu0 %v453
        %v535 = vpop.f32.mrf.mxu0
        %v536 = vadd.f32 %v510, %v535
        %537 = vdwg.mxu0
        %s538 = scalar_lea.vmem [#allocation2], %s299
        %v539 = vld [vmem:[%s538] sm:$0xff]
        %v540 = vld [vmem:[%s538 + $0x8] sm:$0xff]
        %v541 = vld [vmem:[%s538 + $0x10] sm:$0xff]
        %v542 = vadd.f32 %v539, %v530
        %v543 = vadd.f32 %v540, %v533
        %v544 = vadd.f32 %v541, %v536
        %545 = vst.msk [vmem:[%s538] sm:$0xff] %vm355, %v542
        %546 = vst.msk [vmem:[%s538 + $0x8] sm:$0xff] %vm355, %v543
        %547 = vst.msk [vmem:[%s538 + $0x10] sm:$0xff] %vm355, %v544
        %s548 = scalar_lea.vmem [#allocation2], %s304
        %v549 = vld [vmem:[%s548] sm:$0xff]
        %v550 = vld [vmem:[%s548 + $0x8] sm:$0xff]
        %v551 = vld [vmem:[%s548 + $0x10] sm:$0xff]
        %555 = vrot.lane.b32.xlu0 %v530, 112
        %v556 = vpop.permute.xlu0 %555
        %557 = vrot.lane.b32.xlu0 %v533, 112
        %v558 = vpop.permute.xlu0 %557
        %559 = vrot.lane.b32.xlu0 %v536, 112
        %v560 = vpop.permute.xlu0 %559
        %v564 = vadd.f32 %v549, %v556
        %v565 = vadd.f32 %v550, %v558
        %v566 = vadd.f32 %v551, %v560
        %567 = vst.msk [vmem:[%s548] sm:$0xff] %vm355, %v564
        %568 = vst.msk [vmem:[%s548 + $0x8] sm:$0xff] %vm355, %v565
        %569 = vst.msk [vmem:[%s548 + $0x10] sm:$0xff] %vm355, %v566
        %s570 = scalar_lea.vmem [#allocation2], %s309
        %v571 = vld [vmem:[%s570] sm:$0xff]
        %v572 = vld [vmem:[%s570 + $0x8] sm:$0xff]
        %v573 = vld [vmem:[%s570 + $0x10] sm:$0xff]
        %574 = vrot.lane.b32.xlu0 %v530, 96
        %v575 = vpop.permute.xlu0 %574
        %576 = vrot.lane.b32.xlu0 %v533, 96
        %v577 = vpop.permute.xlu0 %576
        %578 = vrot.lane.b32.xlu0 %v536, 96
        %v579 = vpop.permute.xlu0 %578
        %v583 = vadd.f32 %v571, %v575
        %v584 = vadd.f32 %v572, %v577
        %v585 = vadd.f32 %v573, %v579
        %586 = vst.msk [vmem:[%s570] sm:$0xff] %vm355, %v583
        %587 = vst.msk [vmem:[%s570 + $0x8] sm:$0xff] %vm355, %v584
        %588 = vst.msk [vmem:[%s570 + $0x10] sm:$0xff] %vm355, %v585
        %s589 = scalar_lea.vmem [#allocation2], %s314
        %v590 = vld [vmem:[%s589] sm:$0xff]
        %v591 = vld [vmem:[%s589 + $0x8] sm:$0xff]
        %v592 = vld [vmem:[%s589 + $0x10] sm:$0xff]
        %593 = vrot.lane.b32.xlu0 %v530, 80
        %v594 = vpop.permute.xlu0 %593
        %595 = vrot.lane.b32.xlu0 %v533, 80
        %v596 = vpop.permute.xlu0 %595
        %597 = vrot.lane.b32.xlu0 %v536, 80
        %v598 = vpop.permute.xlu0 %597
        %v602 = vadd.f32 %v590, %v594
        %v603 = vadd.f32 %v591, %v596
        %v604 = vadd.f32 %v592, %v598
        %605 = vst.msk [vmem:[%s589] sm:$0xff] %vm355, %v602
        %606 = vst.msk [vmem:[%s589 + $0x8] sm:$0xff] %vm355, %v603
        %607 = vst.msk [vmem:[%s589 + $0x10] sm:$0xff] %vm355, %v604
        // Predicated region
        $region49: #{reconstruct_mask2wave.1} parent=39 // pred_check
          %p608 = pneg %p290
        $region50: #{reconstruct_mask2wave.1} parent=39 // pred_check_branch
          %610 = sbr.rel (%p608) target = $region52
        $region51: #{reconstruct_mask2wave.1} parent=39 // pred_region
          %v611 = vld [vmem:[#allocation2 + $0x2] sm:$0xff]
          %v612 = vld [vmem:[#allocation2 + $0xa] sm:$0xff]
          %v613 = vld [vmem:[%s4] sm:$0xff]
          %v614 = vld [vmem:[%s4 + $0x8] sm:$0xff]
          %v615 = vmul.f32 %v611, %v613
          %v616 = vmul.f32 %v612, %v614
          %v617 = vand.u32 2147483647, %v615
          %v618 = vand.u32 2147483647, %v616
          %v619 = vsel %vm355, %v617, -inf
          %v620 = vsel %vm355, %v618, -inf
          %v621 = vmax.f32 %v619, %v620
          %622 = vmax.xlane.f32.xlu0 %v621
          %v623 = vpop.xlane.xlu0 %622
          %v624 = vrot.slane %v623, 4
          %v625 = vmax.f32 %v623, %v624
          %v626 = vrot.slane %v625, 2
          %v627 = vmax.f32 %v625, %v626
          %v628 = vrot.slane %v627, 1
          %v629 = vmax.f32 %v627, %v628
          %s630 = vtos %v629
          %v631 = vstv %s630
          %vm632 = vcmp.gt.f32.partialorder %v631, 32768.0
          %v633 = vrcp.pop %v631
          %v634 = vmul.f32 %v633, 16384.0
          %v635 = vsel %vm632, %v634, 1.0
          %v636 = vmul.f32 %v615, %v635
          %v637 = vmul.f32 %v616, %v635
          %v638 = vmax.f32 %v636, -32768.0
          %v639 = vmax.f32 %v637, -32768.0
          %v640 = vmin.f32 %v638, 32767.0
          %v641 = vmin.f32 %v639, 32767.0
          %v642 = vcvt.f32.s32.to.zero.pseudo %v640
          %v643 = vcvt.f32.s32.to.zero.pseudo %v641
          %v644 = vpack.c.b16 %v642, %v642
          %v645 = vpack.c.b16 %v643, %v643
          %vm646 = vcmask 125952
          %647 = vst.msk [vmem:[%s289] sm:$0xf] %vm646, %v644
          %648 = vst.msk [vmem:[%s289 + $0x4] sm:$0xf] %vm646, %v645
        $region52: #{reconstruct_mask2wave.1} parent=39 // pred_fallthru
          _
        %p649 = scmp.lt.s32.totalorder %s21, 1
        %s650 = scalar_select %p649, %s21, 1
        %s651 = smul.addr %s650, 2
        %s652 = smul.addr %s651, 4
        %s653 = scalar_lea.vmem %s5, %s652
        // Predicated region
        $region53: #{reconstruct_mask2wave.1} parent=39 // pred_check
          %p654 = pneg %p164
        $region54: #{reconstruct_mask2wave.1} parent=39 // pred_check_branch
          %656 = sbr.rel (%p654) target = $region56
        $region55: #{reconstruct_mask2wave.1} parent=39 // pred_region
          _
        $region56: #{reconstruct_mask2wave.1} parent=39 // pred_fallthru
          _
      $region40: #{reconstruct_mask2wave.1} parent=5 // pred_fallthru
        _
      %p657 = scmp.le.s32.totalorder 2, %s12
      // Predicated region
      $region57: #{reconstruct_mask2wave.1} parent=5 // pred_check
        %p658 = pneg %p657
      $region58: #{reconstruct_mask2wave.1} parent=5 // pred_check_branch
        %660 = sbr.rel (%p658) target = $region60
      $region59: #{reconstruct_mask2wave.1} parent=5 // pred_region
        %s661 = ssub.s32 %s12, 2
        // Predicated region
        $region61: #{reconstruct_mask2wave.1} parent=59 // pred_check
          %p662 = pneg %p170
        $region62: #{reconstruct_mask2wave.1} parent=59 // pred_check_branch
          %664 = sbr.rel (%p662) target = $region64
        $region63: #{reconstruct_mask2wave.1} parent=59 // pred_region
          %p665 = scmp.lt.s32.totalorder %s23, 1
          %s666 = scalar_select %p665, %s23, 1
          %s667 = smul.addr %s666, 2
          %s668 = smul.addr %s667, 4
          %s669 = scalar_lea.vmem %s5, %s668
        $region64: #{reconstruct_mask2wave.1} parent=59 // pred_fallthru
          _
      $region60: #{reconstruct_mask2wave.1} parent=5 // pred_fallthru
        _
    $region6: #{reconstruct_mask2wave.1} parent=1 // loop_footer
      %s16 = sadd.s32 1, %s12
    $region7: #{reconstruct_mask2wave.1} parent=1 // loop_footer_branch
      %11 = sbr.rel target = $region3
    $region8: #{reconstruct_mask2wave.1} parent=1 // loop_exit
      _
    %670 = vsyncpa [#allocation4], 1
    %s671 = scalar_lea.sflag [#allocation4], 1
    %672 = vsyncpa %s671, 1

</llo_original>
